<compile_context>
chip_gen: v5e
topology: v5e:2x2
jax: 0.10.0
libtpu: 0.0.40
codegen_flags: <defaults>
</compile_context>

<pallas_src>
import jax
import jax.numpy as jnp
from jax.experimental import pallas as pl
from jax.experimental.pallas import tpu as pltpu

WIN_SIZE = 7
K1 = 0.01
K2 = 0.03


def _bf16_terms(a_f32):
    """3-term bf16 split of an f32 array (t0 + t1 + t2 ~= a to ~2^-24 rel)."""
    t0 = a_f32.astype(jnp.bfloat16)
    r1 = a_f32 - t0.astype(jnp.float32)
    t1 = r1.astype(jnp.bfloat16)
    r2 = r1 - t1.astype(jnp.float32)
    t2 = r2.astype(jnp.bfloat16)
    return t0, t1, t2


def _dot_f32_by_band(a_f32, band_bf16):
    """a_f32 (M,K) @ band (K,N); band entries in {0,1}: 3 bf16 MXU passes."""
    t0, t1, t2 = _bf16_terms(a_f32)
    out = jnp.dot(t0, band_bf16, preferred_element_type=jnp.float32)
    out = out + jnp.dot(t1, band_bf16, preferred_element_type=jnp.float32)
    out = out + jnp.dot(t2, band_bf16, preferred_element_type=jnp.float32)
    return out


def _dot_band_by_f32(band_bf16, a_f32):
    """band (M,K) @ a_f32 (K,N); band entries in {0,1}: 3 bf16 MXU passes."""
    t0, t1, t2 = _bf16_terms(a_f32)
    out = jnp.dot(band_bf16, t0, preferred_element_type=jnp.float32)
    out = out + jnp.dot(band_bf16, t1, preferred_element_type=jnp.float32)
    out = out + jnp.dot(band_bf16, t2, preferred_element_type=jnp.float32)
    return out


def _band01(shape, win, out_axis):
    """0/1 banded window-sum matrix in bf16 (exactly representable).

    out_axis=1: shape (n_in, n_out), band[i, o] = 1 iff o <= i < o + win
    out_axis=0: shape (n_out, n_in), band[o, i] = 1 iff o <= i < o + win
    """
    i = jax.lax.broadcasted_iota(jnp.int32, shape, 1 - out_axis)
    o = jax.lax.broadcasted_iota(jnp.int32, shape, out_axis)
    return jnp.where((i >= o) & (i < o + win), 1.0, 0.0).astype(jnp.bfloat16)


def _make_ssim_kernel(h, w, win, row_sums_on_mxu):
    hout = h - win + 1
    wout = w - win + 1
    np_win = win * win
    inv_np = 1.0 / np_win
    cov_norm = np_win / (np_win - 1)

    def kernel(dr_ref, x_ref, y_ref, sum_ref):
        # dr_ref : SMEM (N,)      scalar-prefetched data_range
        # x_ref  : VMEM (1, H, W) one image per grid step
        # y_ref  : VMEM (1, H, W)
        # sum_ref: VMEM (1, 1, 1) per-image SSIM-map sum (mean fused in-kernel)
        b = pl.program_id(0)
        x = x_ref[0].astype(jnp.float32)
        y = y_ref[0].astype(jnp.float32)

        # Column-direction window sum: (.., W) @ (W, Wout) on the MXU.
        col_band = _band01((w, wout), win, out_axis=1)

        if row_sums_on_mxu:
            # v6e / v7x: both window-sum directions on the MXU; the VPU only
            # does the three elementwise products and the SSIM-map arithmetic.
            row_band = _band01((hout, h), win, out_axis=0)

            def window_mean(m):                       # (H, W) -> (Hout, Wout)
                cm = _dot_f32_by_band(m, col_band)    # (H, Wout)
                return _dot_band_by_f32(row_band, cm) * inv_np

            ux = window_mean(x)
            uy = window_mean(y)
            uxx = window_mean(x * x)
            uyy = window_mean(y * y)
            uxy = window_mean(x * y)
        else:
            # v5e-class chips (weak MXU): row-direction window sums on the VPU
            # with one shared shifted-slice loop for all five moments.
            xs = x[0:hout, :]
            ys = y[0:hout, :]
            rx, ry = xs, ys
            rxx, ryy, rxy = xs * xs, ys * ys, xs * ys
            for di in range(1, win):
                xs = x[di:di + hout, :]
                ys = y[di:di + hout, :]
                rx = rx + xs
                ry = ry + ys
                rxx = rxx + xs * xs
                ryy = ryy + ys * ys
                rxy = rxy + xs * ys

            def col_mean(m):                          # (Hout, W) -> (Hout, Wout)
                return _dot_f32_by_band(m, col_band) * inv_np

            ux, uy = col_mean(rx), col_mean(ry)
            uxx, uyy, uxy = col_mean(rxx), col_mean(ryy), col_mean(rxy)

        dr = dr_ref[b].astype(jnp.float32)
        c1 = (K1 * dr) ** 2
        c2 = (K2 * dr) ** 2

        vx = cov_norm * (uxx - ux * ux)
        vy = cov_norm * (uyy - uy * uy)
        vxy = cov_norm * (uxy - ux * uy)

        a1 = 2.0 * ux * uy + c1
        a2 = 2.0 * vxy + c2
        b1 = ux * ux + uy * uy + c1
        b2 = vx + vy + c2

        # Divide -> reciprocal (EUP slot) * multiply (VPU slot).
        s = (a1 * a2) * pl.reciprocal(b1 * b2, approx=False)

        # Fused reduction: only one scalar per image leaves VMEM.
        row_sum = jnp.sum(s, axis=1, keepdims=True)             # (Hout, 1)
        sum_ref[0] = jnp.sum(row_sum, axis=0, keepdims=True)    # (1, 1)

    return kernel


def _row_sums_on_mxu_default():
    # Keep the row window-sum on the VPU for pre-v6 chips (small MXUs where
    # the banded matmuls are the binding slot); use the MXU for the row sums
    # on v6e / v7x, where the VALU would otherwise bind.
    try:
        kind = jax.devices()[0].device_kind.lower()
    except Exception:
        return True
    return not any(tag in kind for tag in ("v2", "v3", "v4", "v5"))


def ssim_loss(x, y, data_range, win_size=WIN_SIZE, row_sums_on_mxu=None):
    """x, y: (N, 1, H, W); data_range: (N,). Returns scalar f32 loss."""
    n, c, h, w = x.shape
    assert c == 1, "SSIMLoss conv weight is (1,1,7,7): single channel expected"
    assert y.shape == x.shape
    assert h >= win_size and w >= win_size, "spatial dims must be >= win_size"
    hout = h - win_size + 1
    wout = w - win_size + 1

    if row_sums_on_mxu is None:
        row_sums_on_mxu = _row_sums_on_mxu_default()

    # Keep the caller's dtype (e.g. bf16) through the DMA; cast in-kernel.
    x3 = x.reshape(n, h, w)
    y3 = y.reshape(n, h, w)
    dr = data_range.reshape(n).astype(jnp.float32)

    # TODO(synk): for frames too large to hold (H, W) plus moments in VMEM
    # (notably v7x's 64 MiB), add an H-chunked path with a (win_size-1)-row
    # halo emitting per-chunk partial sums.

    kernel = _make_ssim_kernel(h, w, win_size, row_sums_on_mxu)

    sums = pl.pallas_call(
        kernel,
        out_shape=jax.ShapeDtypeStruct((n, 1, 1), jnp.float32),
        grid_spec=pltpu.PrefetchScalarGridSpec(
            num_scalar_prefetch=1,
            # One image per step: long grid -> DMA/compute overlap, clean
            # megacore / 2-TensorCore sharding, no batch padding needed.
            grid=(n,),
            in_specs=[
                pl.BlockSpec((1, h, w), lambda b, dr_ref: (b, 0, 0)),
                pl.BlockSpec((1, h, w), lambda b, dr_ref: (b, 0, 0)),
            ],
            out_specs=pl.BlockSpec((1, 1, 1), lambda b, dr_ref: (b, 0, 0)),
        ),
        compiler_params=pltpu.CompilerParams(
            dimension_semantics=("parallel",),
            vmem_limit_bytes=32 * 1024 * 1024,
        ),
    )(dr, x3, y3)

    total = jnp.sum(sums)
    return 1.0 - total / (n * hout * wout)


def _reference_ssim_loss(x, y, data_range, win_size=WIN_SIZE):
    """Plain-JAX reference mirroring the PyTorch module (for verification)."""
    np_win = win_size * win_size
    cov_norm = np_win / (np_win - 1)
    wgt = jnp.ones((1, 1, win_size, win_size), jnp.float32) / np_win
    conv = lambda z: jax.lax.conv_general_dilated(
        z.astype(jnp.float32), wgt, (1, 1), "VALID",
        dimension_numbers=("NCHW", "OIHW", "NCHW"),
        precision=jax.lax.Precision.HIGHEST)
    dr = data_range.astype(jnp.float32)[:, None, None, None]
    c1 = (K1 * dr) ** 2
    c2 = (K2 * dr) ** 2
    ux, uy = conv(x), conv(y)
    uxx, uyy, uxy = conv(x * x), conv(y * y), conv(x * y)
    vx = cov_norm * (uxx - ux * ux)
    vy = cov_norm * (uyy - uy * uy)
    vxy = cov_norm * (uxy - ux * uy)
    a1, a2 = 2 * ux * uy + c1, 2 * vxy + c2
    b1, b2 = ux ** 2 + uy ** 2 + c1, vx + vy + c2
    s = a1 * a2 / (b1 * b2)
    return 1.0 - jnp.mean(s)


if __name__ == "__main__":
    key = jax.random.PRNGKey(0)
    kx, ky = jax.random.split(key)
    N, C, H, W = 2, 1, 16, 16          # NCHW, single channel
    x = jax.random.uniform(kx, (N, C, H, W), jnp.float32)
    y = jax.random.uniform(ky, (N, C, H, W), jnp.float32)
    data_range = jnp.array([1.0, 0.8], jnp.float32)

    ref = _reference_ssim_loss(x, y, data_range)

    # Verify both statically-selected paths (v5e VPU-row and v6e/v7x MXU-row);
    # both are portable, only the perf trade-off differs.
    for on_mxu in (False, True):
        loss = ssim_loss(x, y, data_range, row_sums_on_mxu=on_mxu)
        jax.block_until_ready(loss)
        assert jnp.allclose(loss, ref, atol=1e-4, rtol=1e-4), (on_mxu, loss, ref)

    # Auto-dispatched path for the local device kind.
    loss = ssim_loss(x, y, data_range)
    jax.block_until_ready(loss)
    assert jnp.allclose(loss, ref, atol=1e-4, rtol=1e-4), (loss, ref)

    print("KERNEL_OK")
</pallas_src>

<mosaic_0001>
module attributes {stable_mosaic.version = 11 : i64} {
  func.func @kernel(%arg0: i32, %arg1: memref<2xf32, #tpu.memory_space<smem>>, %arg2: memref<1x16x16xf32, #tpu.memory_space<vmem>>, %arg3: memref<1x16x16xf32, #tpu.memory_space<vmem>>, %arg4: memref<1x1x1xf32, #tpu.memory_space<vmem>>) attributes {dimension_semantics = [#tpu.dimension_semantics<parallel>], iteration_bounds = array<i64: 2>, scalar_prefetch = 1 : i64, scratch_operands = 0 : i64, tpu.core_type = #tpu.core_type<tc>, window_params = [{transform_indices = @transform_0, window_bounds = array<i64: 1, 16, 16>}, {transform_indices = @transform_1, window_bounds = array<i64: 1, 16, 16>}, {transform_indices = @transform_2, window_bounds = array<i64: 1, 1, 1>}]} {
    %c0 = arith.constant 0 : index
    %c0_0 = arith.constant 0 : index
    %c0_1 = arith.constant 0 : index
    %0 = vector.load %arg2[%c0, %c0_0, %c0_1] : memref<1x16x16xf32, #tpu.memory_space<vmem>>, vector<1x16x16xf32>
    %1 = vector.shape_cast %0 : vector<1x16x16xf32> to vector<16x16xf32>
    %c0_2 = arith.constant 0 : index
    %c0_3 = arith.constant 0 : index
    %c0_4 = arith.constant 0 : index
    %2 = vector.load %arg3[%c0_2, %c0_3, %c0_4] : memref<1x16x16xf32, #tpu.memory_space<vmem>>, vector<1x16x16xf32>
    %3 = vector.shape_cast %2 : vector<1x16x16xf32> to vector<16x16xf32>
    %4 = tpu.iota {dimensions = array<i32: 0>} : vector<16x10xi32>
    %5 = tpu.iota {dimensions = array<i32: 1>} : vector<16x10xi32>
    %6 = arith.cmpi sge, %4, %5 : vector<16x10xi32>
    %c7_i32 = arith.constant 7 : i32
    %7 = vector.broadcast %c7_i32 : i32 to vector<16x10xi32>
    %8 = arith.addi %5, %7 : vector<16x10xi32>
    %9 = arith.cmpi slt, %4, %8 : vector<16x10xi32>
    %10 = arith.andi %6, %9 : vector<16x10xi1>
    %cst = arith.constant 1.000000e+00 : f32
    %cst_5 = arith.constant 0.000000e+00 : f32
    %11 = vector.broadcast %cst : f32 to vector<16x10xf32>
    %12 = vector.broadcast %cst_5 : f32 to vector<16x10xf32>
    %13 = arith.select %10, %11, %12 : vector<16x10xi1>, vector<16x10xf32>
    %14 = arith.truncf %13 : vector<16x10xf32> to vector<16x10xbf16>
    %15 = vector.extract_strided_slice %1 {offsets = [0, 0], sizes = [10, 16], strides = [1, 1]} : vector<16x16xf32> to vector<10x16xf32>
    %16 = vector.extract_strided_slice %3 {offsets = [0, 0], sizes = [10, 16], strides = [1, 1]} : vector<16x16xf32> to vector<10x16xf32>
    %17 = arith.mulf %15, %15 : vector<10x16xf32>
    %18 = arith.mulf %16, %16 : vector<10x16xf32>
    %19 = arith.mulf %15, %16 : vector<10x16xf32>
    %20 = vector.extract_strided_slice %1 {offsets = [1, 0], sizes = [10, 16], strides = [1, 1]} : vector<16x16xf32> to vector<10x16xf32>
    %21 = vector.extract_strided_slice %3 {offsets = [1, 0], sizes = [10, 16], strides = [1, 1]} : vector<16x16xf32> to vector<10x16xf32>
    %22 = arith.addf %15, %20 : vector<10x16xf32>
    %23 = arith.addf %16, %21 : vector<10x16xf32>
    %24 = arith.mulf %20, %20 : vector<10x16xf32>
    %25 = arith.addf %17, %24 : vector<10x16xf32>
    %26 = arith.mulf %21, %21 : vector<10x16xf32>
    %27 = arith.addf %18, %26 : vector<10x16xf32>
    %28 = arith.mulf %20, %21 : vector<10x16xf32>
    %29 = arith.addf %19, %28 : vector<10x16xf32>
    %30 = vector.extract_strided_slice %1 {offsets = [2, 0], sizes = [10, 16], strides = [1, 1]} : vector<16x16xf32> to vector<10x16xf32>
    %31 = vector.extract_strided_slice %3 {offsets = [2, 0], sizes = [10, 16], strides = [1, 1]} : vector<16x16xf32> to vector<10x16xf32>
    %32 = arith.addf %22, %30 : vector<10x16xf32>
    %33 = arith.addf %23, %31 : vector<10x16xf32>
    %34 = arith.mulf %30, %30 : vector<10x16xf32>
    %35 = arith.addf %25, %34 : vector<10x16xf32>
    %36 = arith.mulf %31, %31 : vector<10x16xf32>
    %37 = arith.addf %27, %36 : vector<10x16xf32>
    %38 = arith.mulf %30, %31 : vector<10x16xf32>
    %39 = arith.addf %29, %38 : vector<10x16xf32>
    %40 = vector.extract_strided_slice %1 {offsets = [3, 0], sizes = [10, 16], strides = [1, 1]} : vector<16x16xf32> to vector<10x16xf32>
    %41 = vector.extract_strided_slice %3 {offsets = [3, 0], sizes = [10, 16], strides = [1, 1]} : vector<16x16xf32> to vector<10x16xf32>
    %42 = arith.addf %32, %40 : vector<10x16xf32>
    %43 = arith.addf %33, %41 : vector<10x16xf32>
    %44 = arith.mulf %40, %40 : vector<10x16xf32>
    %45 = arith.addf %35, %44 : vector<10x16xf32>
    %46 = arith.mulf %41, %41 : vector<10x16xf32>
    %47 = arith.addf %37, %46 : vector<10x16xf32>
    %48 = arith.mulf %40, %41 : vector<10x16xf32>
    %49 = arith.addf %39, %48 : vector<10x16xf32>
    %50 = vector.extract_strided_slice %1 {offsets = [4, 0], sizes = [10, 16], strides = [1, 1]} : vector<16x16xf32> to vector<10x16xf32>
    %51 = vector.extract_strided_slice %3 {offsets = [4, 0], sizes = [10, 16], strides = [1, 1]} : vector<16x16xf32> to vector<10x16xf32>
    %52 = arith.addf %42, %50 : vector<10x16xf32>
    %53 = arith.addf %43, %51 : vector<10x16xf32>
    %54 = arith.mulf %50, %50 : vector<10x16xf32>
    %55 = arith.addf %45, %54 : vector<10x16xf32>
    %56 = arith.mulf %51, %51 : vector<10x16xf32>
    %57 = arith.addf %47, %56 : vector<10x16xf32>
    %58 = arith.mulf %50, %51 : vector<10x16xf32>
    %59 = arith.addf %49, %58 : vector<10x16xf32>
    %60 = vector.extract_strided_slice %1 {offsets = [5, 0], sizes = [10, 16], strides = [1, 1]} : vector<16x16xf32> to vector<10x16xf32>
    %61 = vector.extract_strided_slice %3 {offsets = [5, 0], sizes = [10, 16], strides = [1, 1]} : vector<16x16xf32> to vector<10x16xf32>
    %62 = arith.addf %52, %60 : vector<10x16xf32>
    %63 = arith.addf %53, %61 : vector<10x16xf32>
    %64 = arith.mulf %60, %60 : vector<10x16xf32>
    %65 = arith.addf %55, %64 : vector<10x16xf32>
    %66 = arith.mulf %61, %61 : vector<10x16xf32>
    %67 = arith.addf %57, %66 : vector<10x16xf32>
    %68 = arith.mulf %60, %61 : vector<10x16xf32>
    %69 = arith.addf %59, %68 : vector<10x16xf32>
    %70 = vector.extract_strided_slice %1 {offsets = [6, 0], sizes = [10, 16], strides = [1, 1]} : vector<16x16xf32> to vector<10x16xf32>
    %71 = vector.extract_strided_slice %3 {offsets = [6, 0], sizes = [10, 16], strides = [1, 1]} : vector<16x16xf32> to vector<10x16xf32>
    %72 = arith.addf %62, %70 : vector<10x16xf32>
    %73 = arith.addf %63, %71 : vector<10x16xf32>
    %74 = arith.mulf %70, %70 : vector<10x16xf32>
    %75 = arith.addf %65, %74 : vector<10x16xf32>
    %76 = arith.mulf %71, %71 : vector<10x16xf32>
    %77 = arith.addf %67, %76 : vector<10x16xf32>
    %78 = arith.mulf %70, %71 : vector<10x16xf32>
    %79 = arith.addf %69, %78 : vector<10x16xf32>
    %80 = arith.truncf %72 : vector<10x16xf32> to vector<10x16xbf16>
    %81 = arith.extf %80 : vector<10x16xbf16> to vector<10x16xf32>
    %82 = arith.subf %72, %81 : vector<10x16xf32>
    %83 = arith.truncf %82 : vector<10x16xf32> to vector<10x16xbf16>
    %84 = arith.extf %83 : vector<10x16xbf16> to vector<10x16xf32>
    %85 = arith.subf %82, %84 : vector<10x16xf32>
    %86 = arith.truncf %85 : vector<10x16xf32> to vector<10x16xbf16>
    %cst_6 = arith.constant dense<0.000000e+00> : vector<10x10xf32>
    %87 = tpu.matmul %80, %14, %cst_6 {dimension_numbers = #tpu.dot_dimension_numbers<[1], [0], [0], [1], [0, 0, 1, 1], [], []>} : vector<10x16xbf16>, vector<16x10xbf16>, vector<10x10xf32> -> vector<10x10xf32>
    %cst_7 = arith.constant dense<0.000000e+00> : vector<10x10xf32>
    %88 = tpu.matmul %83, %14, %cst_7 {dimension_numbers = #tpu.dot_dimension_numbers<[1], [0], [0], [1], [0, 0, 1, 1], [], []>} : vector<10x16xbf16>, vector<16x10xbf16>, vector<10x10xf32> -> vector<10x10xf32>
    %89 = arith.addf %87, %88 : vector<10x10xf32>
    %cst_8 = arith.constant dense<0.000000e+00> : vector<10x10xf32>
    %90 = tpu.matmul %86, %14, %cst_8 {dimension_numbers = #tpu.dot_dimension_numbers<[1], [0], [0], [1], [0, 0, 1, 1], [], []>} : vector<10x16xbf16>, vector<16x10xbf16>, vector<10x10xf32> -> vector<10x10xf32>
    %91 = arith.addf %89, %90 : vector<10x10xf32>
    %cst_9 = arith.constant 0.0204081628 : f32
    %92 = vector.broadcast %cst_9 : f32 to vector<10x10xf32>
    %93 = arith.mulf %91, %92 : vector<10x10xf32>
    %94 = arith.truncf %73 : vector<10x16xf32> to vector<10x16xbf16>
    %95 = arith.extf %94 : vector<10x16xbf16> to vector<10x16xf32>
    %96 = arith.subf %73, %95 : vector<10x16xf32>
    %97 = arith.truncf %96 : vector<10x16xf32> to vector<10x16xbf16>
    %98 = arith.extf %97 : vector<10x16xbf16> to vector<10x16xf32>
    %99 = arith.subf %96, %98 : vector<10x16xf32>
    %100 = arith.truncf %99 : vector<10x16xf32> to vector<10x16xbf16>
    %cst_10 = arith.constant dense<0.000000e+00> : vector<10x10xf32>
    %101 = tpu.matmul %94, %14, %cst_10 {dimension_numbers = #tpu.dot_dimension_numbers<[1], [0], [0], [1], [0, 0, 1, 1], [], []>} : vector<10x16xbf16>, vector<16x10xbf16>, vector<10x10xf32> -> vector<10x10xf32>
    %cst_11 = arith.constant dense<0.000000e+00> : vector<10x10xf32>
    %102 = tpu.matmul %97, %14, %cst_11 {dimension_numbers = #tpu.dot_dimension_numbers<[1], [0], [0], [1], [0, 0, 1, 1], [], []>} : vector<10x16xbf16>, vector<16x10xbf16>, vector<10x10xf32> -> vector<10x10xf32>
    %103 = arith.addf %101, %102 : vector<10x10xf32>
    %cst_12 = arith.constant dense<0.000000e+00> : vector<10x10xf32>
    %104 = tpu.matmul %100, %14, %cst_12 {dimension_numbers = #tpu.dot_dimension_numbers<[1], [0], [0], [1], [0, 0, 1, 1], [], []>} : vector<10x16xbf16>, vector<16x10xbf16>, vector<10x10xf32> -> vector<10x10xf32>
    %105 = arith.addf %103, %104 : vector<10x10xf32>
    %cst_13 = arith.constant 0.0204081628 : f32
    %106 = vector.broadcast %cst_13 : f32 to vector<10x10xf32>
    %107 = arith.mulf %105, %106 : vector<10x10xf32>
    %108 = arith.truncf %75 : vector<10x16xf32> to vector<10x16xbf16>
    %109 = arith.extf %108 : vector<10x16xbf16> to vector<10x16xf32>
    %110 = arith.subf %75, %109 : vector<10x16xf32>
    %111 = arith.truncf %110 : vector<10x16xf32> to vector<10x16xbf16>
    %112 = arith.extf %111 : vector<10x16xbf16> to vector<10x16xf32>
    %113 = arith.subf %110, %112 : vector<10x16xf32>
    %114 = arith.truncf %113 : vector<10x16xf32> to vector<10x16xbf16>
    %cst_14 = arith.constant dense<0.000000e+00> : vector<10x10xf32>
    %115 = tpu.matmul %108, %14, %cst_14 {dimension_numbers = #tpu.dot_dimension_numbers<[1], [0], [0], [1], [0, 0, 1, 1], [], []>} : vector<10x16xbf16>, vector<16x10xbf16>, vector<10x10xf32> -> vector<10x10xf32>
    %cst_15 = arith.constant dense<0.000000e+00> : vector<10x10xf32>
    %116 = tpu.matmul %111, %14, %cst_15 {dimension_numbers = #tpu.dot_dimension_numbers<[1], [0], [0], [1], [0, 0, 1, 1], [], []>} : vector<10x16xbf16>, vector<16x10xbf16>, vector<10x10xf32> -> vector<10x10xf32>
    %117 = arith.addf %115, %116 : vector<10x10xf32>
    %cst_16 = arith.constant dense<0.000000e+00> : vector<10x10xf32>
    %118 = tpu.matmul %114, %14, %cst_16 {dimension_numbers = #tpu.dot_dimension_numbers<[1], [0], [0], [1], [0, 0, 1, 1], [], []>} : vector<10x16xbf16>, vector<16x10xbf16>, vector<10x10xf32> -> vector<10x10xf32>
    %119 = arith.addf %117, %118 : vector<10x10xf32>
    %cst_17 = arith.constant 0.0204081628 : f32
    %120 = vector.broadcast %cst_17 : f32 to vector<10x10xf32>
    %121 = arith.mulf %119, %120 : vector<10x10xf32>
    %122 = arith.truncf %77 : vector<10x16xf32> to vector<10x16xbf16>
    %123 = arith.extf %122 : vector<10x16xbf16> to vector<10x16xf32>
    %124 = arith.subf %77, %123 : vector<10x16xf32>
    %125 = arith.truncf %124 : vector<10x16xf32> to vector<10x16xbf16>
    %126 = arith.extf %125 : vector<10x16xbf16> to vector<10x16xf32>
    %127 = arith.subf %124, %126 : vector<10x16xf32>
    %128 = arith.truncf %127 : vector<10x16xf32> to vector<10x16xbf16>
    %cst_18 = arith.constant dense<0.000000e+00> : vector<10x10xf32>
    %129 = tpu.matmul %122, %14, %cst_18 {dimension_numbers = #tpu.dot_dimension_numbers<[1], [0], [0], [1], [0, 0, 1, 1], [], []>} : vector<10x16xbf16>, vector<16x10xbf16>, vector<10x10xf32> -> vector<10x10xf32>
    %cst_19 = arith.constant dense<0.000000e+00> : vector<10x10xf32>
    %130 = tpu.matmul %125, %14, %cst_19 {dimension_numbers = #tpu.dot_dimension_numbers<[1], [0], [0], [1], [0, 0, 1, 1], [], []>} : vector<10x16xbf16>, vector<16x10xbf16>, vector<10x10xf32> -> vector<10x10xf32>
    %131 = arith.addf %129, %130 : vector<10x10xf32>
    %cst_20 = arith.constant dense<0.000000e+00> : vector<10x10xf32>
    %132 = tpu.matmul %128, %14, %cst_20 {dimension_numbers = #tpu.dot_dimension_numbers<[1], [0], [0], [1], [0, 0, 1, 1], [], []>} : vector<10x16xbf16>, vector<16x10xbf16>, vector<10x10xf32> -> vector<10x10xf32>
    %133 = arith.addf %131, %132 : vector<10x10xf32>
    %cst_21 = arith.constant 0.0204081628 : f32
    %134 = vector.broadcast %cst_21 : f32 to vector<10x10xf32>
    %135 = arith.mulf %133, %134 : vector<10x10xf32>
    %136 = arith.truncf %79 : vector<10x16xf32> to vector<10x16xbf16>
    %137 = arith.extf %136 : vector<10x16xbf16> to vector<10x16xf32>
    %138 = arith.subf %79, %137 : vector<10x16xf32>
    %139 = arith.truncf %138 : vector<10x16xf32> to vector<10x16xbf16>
    %140 = arith.extf %139 : vector<10x16xbf16> to vector<10x16xf32>
    %141 = arith.subf %138, %140 : vector<10x16xf32>
    %142 = arith.truncf %141 : vector<10x16xf32> to vector<10x16xbf16>
    %cst_22 = arith.constant dense<0.000000e+00> : vector<10x10xf32>
    %143 = tpu.matmul %136, %14, %cst_22 {dimension_numbers = #tpu.dot_dimension_numbers<[1], [0], [0], [1], [0, 0, 1, 1], [], []>} : vector<10x16xbf16>, vector<16x10xbf16>, vector<10x10xf32> -> vector<10x10xf32>
    %cst_23 = arith.constant dense<0.000000e+00> : vector<10x10xf32>
    %144 = tpu.matmul %139, %14, %cst_23 {dimension_numbers = #tpu.dot_dimension_numbers<[1], [0], [0], [1], [0, 0, 1, 1], [], []>} : vector<10x16xbf16>, vector<16x10xbf16>, vector<10x10xf32> -> vector<10x10xf32>
    %145 = arith.addf %143, %144 : vector<10x10xf32>
    %cst_24 = arith.constant dense<0.000000e+00> : vector<10x10xf32>
    %146 = tpu.matmul %142, %14, %cst_24 {dimension_numbers = #tpu.dot_dimension_numbers<[1], [0], [0], [1], [0, 0, 1, 1], [], []>} : vector<10x16xbf16>, vector<16x10xbf16>, vector<10x10xf32> -> vector<10x10xf32>
    %147 = arith.addf %145, %146 : vector<10x10xf32>
    %cst_25 = arith.constant 0.0204081628 : f32
    %148 = vector.broadcast %cst_25 : f32 to vector<10x10xf32>
    %149 = arith.mulf %147, %148 : vector<10x10xf32>
    %150 = arith.index_cast %arg0 : i32 to index
    %151 = memref.load %arg1[%150] : memref<2xf32, #tpu.memory_space<smem>>
    %cst_26 = arith.constant 0.00999999977 : f32
    %152 = arith.mulf %cst_26, %151 : f32
    %153 = arith.mulf %152, %152 : f32
    %cst_27 = arith.constant 3.000000e-02 : f32
    %154 = arith.mulf %cst_27, %151 : f32
    %155 = arith.mulf %154, %154 : f32
    %156 = arith.mulf %93, %93 : vector<10x10xf32>
    %157 = arith.subf %121, %156 : vector<10x10xf32>
    %cst_28 = arith.constant 1.02083337 : f32
    %158 = vector.broadcast %cst_28 : f32 to vector<10x10xf32>
    %159 = arith.mulf %158, %157 : vector<10x10xf32>
    %160 = arith.mulf %107, %107 : vector<10x10xf32>
    %161 = arith.subf %135, %160 : vector<10x10xf32>
    %cst_29 = arith.constant 1.02083337 : f32
    %162 = vector.broadcast %cst_29 : f32 to vector<10x10xf32>
    %163 = arith.mulf %162, %161 : vector<10x10xf32>
    %164 = arith.mulf %93, %107 : vector<10x10xf32>
    %165 = arith.subf %149, %164 : vector<10x10xf32>
    %cst_30 = arith.constant 1.02083337 : f32
    %166 = vector.broadcast %cst_30 : f32 to vector<10x10xf32>
    %167 = arith.mulf %166, %165 : vector<10x10xf32>
    %cst_31 = arith.constant 2.000000e+00 : f32
    %168 = vector.broadcast %cst_31 : f32 to vector<10x10xf32>
    %169 = arith.mulf %168, %93 : vector<10x10xf32>
    %170 = arith.mulf %169, %107 : vector<10x10xf32>
    %171 = vector.broadcast %153 : f32 to vector<10x10xf32>
    %172 = arith.addf %170, %171 : vector<10x10xf32>
    %cst_32 = arith.constant 2.000000e+00 : f32
    %173 = vector.broadcast %cst_32 : f32 to vector<10x10xf32>
    %174 = arith.mulf %173, %167 : vector<10x10xf32>
    %175 = vector.broadcast %155 : f32 to vector<10x10xf32>
    %176 = arith.addf %174, %175 : vector<10x10xf32>
    %177 = arith.mulf %93, %93 : vector<10x10xf32>
    %178 = arith.mulf %107, %107 : vector<10x10xf32>
    %179 = arith.addf %177, %178 : vector<10x10xf32>
    %180 = vector.broadcast %153 : f32 to vector<10x10xf32>
    %181 = arith.addf %179, %180 : vector<10x10xf32>
    %182 = arith.addf %159, %163 : vector<10x10xf32>
    %183 = vector.broadcast %155 : f32 to vector<10x10xf32>
    %184 = arith.addf %182, %183 : vector<10x10xf32>
    %185 = arith.mulf %172, %176 : vector<10x10xf32>
    %186 = arith.mulf %181, %184 : vector<10x10xf32>
    %187 = tpu.reciprocal %186 : vector<10x10xf32> -> vector<10x10xf32>
    %188 = arith.mulf %185, %187 : vector<10x10xf32>
    %cst_33 = arith.constant dense<0.000000e+00> : vector<10xf32>
    %189 = vector.multi_reduction <add>, %188, %cst_33 [1] : vector<10x10xf32> to vector<10xf32>
    %190 = vector.shape_cast %189 : vector<10xf32> to vector<10x1xf32>
    %cst_34 = arith.constant dense<0.000000e+00> : vector<1xf32>
    %191 = vector.multi_reduction <add>, %190, %cst_34 [0] : vector<10x1xf32> to vector<1xf32>
    %192 = vector.shape_cast %191 : vector<1xf32> to vector<1x1xf32>
    %c0_35 = arith.constant 0 : index
    %c0_36 = arith.constant 0 : index
    %c0_37 = arith.constant 0 : index
    %193 = vector.load %arg4[%c0_35, %c0_36, %c0_37] : memref<1x1x1xf32, #tpu.memory_space<vmem>>, vector<1x1x1xf32>
    %194 = vector.shape_cast %193 : vector<1x1x1xf32> to vector<1x1xf32>
    %195 = vector.shape_cast %192 : vector<1x1xf32> to vector<1x1x1xf32>
    tpu.vector_store %arg4[%c0_35, %c0_36, %c0_37], %195 {strides = array<i32>} : memref<1x1x1xf32, #tpu.memory_space<vmem>>, vector<1x1x1xf32>,
    return
  }
  func.func @transform_0(%arg0: i32, %arg1: memref<2xf32, #tpu.memory_space<smem>>) -> (i32, i32, i32) {
    %c0_i32 = arith.constant 0 : i32
    %c0_i32_0 = arith.constant 0 : i32
    %c0_i32_1 = arith.constant 0 : i32
    return %arg0, %c0_i32, %c0_i32_0 : i32, i32, i32
  }
  func.func @transform_1(%arg0: i32, %arg1: memref<2xf32, #tpu.memory_space<smem>>) -> (i32, i32, i32) {
    %c0_i32 = arith.constant 0 : i32
    %c0_i32_0 = arith.constant 0 : i32
    %c0_i32_1 = arith.constant 0 : i32
    return %arg0, %c0_i32, %c0_i32_0 : i32, i32, i32
  }
  func.func @transform_2(%arg0: i32, %arg1: memref<2xf32, #tpu.memory_space<smem>>) -> (i32, i32, i32) {
    %c0_i32 = arith.constant 0 : i32
    %c0_i32_0 = arith.constant 0 : i32
    %c0_i32_1 = arith.constant 0 : i32
    return %arg0, %c0_i32, %c0_i32_0 : i32, i32, i32
  }
}

</mosaic_0001>

<llo_original>
// kernel: tpu_custom_call.1
$region0: #{tpu_custom_call.1}
  #allocation0 [shape = 'u32[]', space=smem, size = 0x4, offset = 0x4, fixed_abs, tag = 'smem constant byte address 0x4 - core index']
  #allocation1 [shape = 'u32[72,128]{1,0:T(1,128)}', space=vmem, size = 0x9000, scoped, tag = 'internal scratch']
  #allocation2 [shape = 's32[1]{0}', space=sflag, size = 0x4, scoped, tag = 'scoped memory for tpu_custom_call.1']
  #allocation3 [shape = 'u8[512]{0}', space=smem, size = 0x200, scoped, tag = 'prefetched SMEM operand 0']
  %s0 = inlined_call_operand.hbm [shape: f32[2], index: 0, kind: input, shape index: {}]
  %s1 = inlined_call_operand.hbm [shape: f32[2,16,16], index: 1, kind: input, shape index: {}]
  %s2 = inlined_call_operand.hbm [shape: f32[2,16,16], index: 2, kind: input, shape index: {}]
  %s3 = inlined_call_operand.vmem [shape: f32[2,1,1], index: 3, kind: output, shape index: {}]
  %s4 = sld [smem:[#allocation0]]
  $region49: #{tpu_custom_call.1} parent=0
    _
  %s6 = ssub.s32 1, %s4
  %s7 = scalar_select 0, %s6, %s4
  %s9 = sshll.u32 %s0, 4
  %s10 = int_to_ptr.hbm [resolvable:$true] %s9
  %12 = dma.hbm_to_smem %s10, 16, [#allocation3], [#allocation2]
  %14 = dma.done [#allocation2], 16
  %15 = sfence
  $region1: #{tpu_custom_call.1} parent=0
    #allocation4 [shape = 'u8[16384]{0}', space=vmem, size = 0x4000, scoped, tag = 'input window, operand 1']
    #allocation5 [shape = 's32[2]{0}', space=sflag, size = 0x8, scoped, tag = 'scoped memory for tpu_custom_call.1']
    #allocation6 [shape = 'u8[16384]{0}', space=vmem, size = 0x4000, scoped, tag = 'input window, operand 2']
    #allocation7 [shape = 's32[2]{0}', space=sflag, size = 0x8, scoped, tag = 'scoped memory for tpu_custom_call.1']
    %16 = vsyncpa [#allocation5], 0
    %s17 = scalar_lea.sflag [#allocation5], 1
    %18 = vsyncpa %s17, 0
    %19 = vsyncpa [#allocation7], 0
    %s20 = scalar_lea.sflag [#allocation7], 1
    %21 = vsyncpa %s20, 0
    loop: start=0, step=1, limit=4
    $region2: #{tpu_custom_call.1} parent=1 // loop_pre_header
      _
    $region3: #{tpu_custom_call.1} parent=1 // loop_header
      %s23 = sphi 0, %s27
      %p24 = scmp.ge.s32.totalorder %s23, 4
      %s33 = sphi 0, %s35
      %s36 = sphi 0, %s33
      %s37 = sphi 0, %s36
      %s53 = sphi 0, %s37
      %s59 = sphi 0, %s61
      %s62 = sphi 0, %s59
      %s63 = sphi 0, %s62
      %s79 = sphi 0, %s63
      %s85 = sphi 0, %s87
      %s88 = sphi 0, %s85
      %s89 = sphi 0, %s88
      %s105 = sphi 0, %s89
    $region4: #{tpu_custom_call.1} parent=1 // loop_header_branch
      %26 = sbr.rel (%p24) target = $region8
    $region5: #{tpu_custom_call.1} parent=1 // loop_body
      %s28 = ssub.s32 %s23, 1
      %s29 = ssub.s32 %s23, 2
      %s30 = sadd.s32 %s23, 1
      %s31 = ssub.s32 %s23, %s30
      %p32 = scmp.eq.s32.totalorder %s31, 0
      %s34 = sadd.s32 %s33, 1
      %s35 = scalar_select %p32, %s33, %s34
      %p38 = pneg %p32
      %p39 = scmp.eq.s32.totalorder %s23, 1
      %p40 = por %p38, %p39
      %p41 = scmp.ne.s32.totalorder %s33, %s36
      %p42 = scmp.eq.s32.totalorder %s23, 0
      %p43 = por %p41, %p42
      %p44 = scmp.ne.s32.totalorder %s33, %s36
      %p45 = scmp.eq.s32.totalorder %s28, 1
      %p46 = por %p44, %p45
      %p47 = scmp.ne.s32.totalorder %s36, %s37
      %p48 = scmp.eq.s32.totalorder %s28, 0
      %p49 = por %p47, %p48
      %p50 = scmp.ne.s32.totalorder %s36, %s37
      %p51 = scmp.eq.s32.totalorder %s29, 1
      %p52 = por %p50, %p51
      %p54 = scmp.ne.s32.totalorder %s37, %s53
      %p55 = scmp.eq.s32.totalorder %s29, 0
      %p56 = por %p54, %p55
      %s57 = ssub.s32 %s23, %s30
      %p58 = scmp.eq.s32.totalorder %s57, 0
      %s60 = sadd.s32 %s59, 1
      %s61 = scalar_select %p58, %s59, %s60
      %p64 = pneg %p58
      %p65 = scmp.eq.s32.totalorder %s23, 1
      %p66 = por %p64, %p65
      %p67 = scmp.ne.s32.totalorder %s59, %s62
      %p68 = scmp.eq.s32.totalorder %s23, 0
      %p69 = por %p67, %p68
      %p70 = scmp.ne.s32.totalorder %s59, %s62
      %p71 = scmp.eq.s32.totalorder %s28, 1
      %p72 = por %p70, %p71
      %p73 = scmp.ne.s32.totalorder %s62, %s63
      %p74 = scmp.eq.s32.totalorder %s28, 0
      %p75 = por %p73, %p74
      %p76 = scmp.ne.s32.totalorder %s62, %s63
      %p77 = scmp.eq.s32.totalorder %s29, 1
      %p78 = por %p76, %p77
      %p80 = scmp.ne.s32.totalorder %s63, %s79
      %p81 = scmp.eq.s32.totalorder %s29, 0
      %p82 = por %p80, %p81
      %s83 = ssub.s32 %s23, %s30
      %p84 = scmp.eq.s32.totalorder %s83, 0
      %s86 = sadd.s32 %s85, 1
      %s87 = scalar_select %p84, %s85, %s86
      %p90 = pneg %p84
      %p91 = scmp.eq.s32.totalorder %s23, 1
      %p92 = por %p90, %p91
      %p93 = scmp.ne.s32.totalorder %s85, %s88
      %p94 = scmp.eq.s32.totalorder %s23, 0
      %p95 = por %p93, %p94
      %p96 = scmp.ne.s32.totalorder %s85, %s88
      %p97 = scmp.eq.s32.totalorder %s28, 1
      %p98 = por %p96, %p97
      %p99 = scmp.ne.s32.totalorder %s88, %s89
      %p100 = scmp.eq.s32.totalorder %s28, 0
      %p101 = por %p99, %p100
      %p102 = scmp.ne.s32.totalorder %s88, %s89
      %p103 = scmp.eq.s32.totalorder %s29, 1
      %p104 = por %p102, %p103
      %p106 = scmp.ne.s32.totalorder %s89, %s105
      %p107 = scmp.eq.s32.totalorder %s29, 0
      %p108 = por %p106, %p107
      %p109 = scmp.le.s32.totalorder 1, %s23
      %p110 = scmp.lt.s32.totalorder %s23, 3
      %p111 = pnand %p109, %p110
      %p112 = pneg %p111
      // Predicated region
      $region9: #{tpu_custom_call.1} parent=5 // pred_check
        _
      $region10: #{tpu_custom_call.1} parent=5 // pred_check_branch
        %114 = sbr.rel (%p111) target = $region12
      $region11: #{tpu_custom_call.1} parent=5 // pred_region
        %s115 = ssub.s32 %s23, 1
      $region12: #{tpu_custom_call.1} parent=5 // pred_fallthru
        _
      %p116 = scmp.lt.s32.totalorder %s23, 2
      // Predicated region
      $region13: #{tpu_custom_call.1} parent=5 // pred_check
        %p117 = pneg %p116
      $region14: #{tpu_custom_call.1} parent=5 // pred_check_branch
        %119 = sbr.rel (%p117) target = $region16
      $region15: #{tpu_custom_call.1} parent=5 // pred_region
        // Predicated region
        $region17: #{tpu_custom_call.1} parent=15 // pred_check
          %p120 = pneg %p43
        $region18: #{tpu_custom_call.1} parent=15 // pred_check_branch
          %122 = sbr.rel (%p120) target = $region20
        $region19: #{tpu_custom_call.1} parent=15 // pred_region
          %s123 = sand.u32 %s33, 1
          %s124 = scalar_lea.sflag [#allocation5], %s123
          %s125 = sand.u32 %s33, 1
          %s126 = smul.addr %s125, 16
          %s127 = scalar_lea.vmem [#allocation4], %s126
          %129 = vsyncadd %s124, 0
          %s130 = smul.addr %s23, 2
          %s131 = smul.addr %s130, 8
          %s132 = scalar_lea.hbm %s1, %s131
          %s133 = sshll.u32 %s132, 4
          %s134 = int_to_ptr.hbm [resolvable:$true] %s133
          %s135 = sshll.u32 %s127, 4
          %s136 = int_to_ptr.vmem [resolvable:$true] %s135
          %141 = dma.hbm_to_vmem [thread:$0]  %s134, 256, %s136, %s124, 128, 128, 8
        $region20: #{tpu_custom_call.1} parent=15 // pred_fallthru
          _
        // Predicated region
        $region21: #{tpu_custom_call.1} parent=15 // pred_check
          %p142 = pneg %p69
        $region22: #{tpu_custom_call.1} parent=15 // pred_check_branch
          %144 = sbr.rel (%p142) target = $region24
        $region23: #{tpu_custom_call.1} parent=15 // pred_region
          %s145 = sand.u32 %s59, 1
          %s146 = scalar_lea.sflag [#allocation7], %s145
          %s147 = sand.u32 %s59, 1
          %s148 = smul.addr %s147, 16
          %s149 = scalar_lea.vmem [#allocation6], %s148
          %151 = vsyncadd %s146, 0
          %s152 = smul.addr %s23, 2
          %s153 = smul.addr %s152, 8
          %s154 = scalar_lea.hbm %s2, %s153
          %s155 = sshll.u32 %s154, 4
          %s156 = int_to_ptr.hbm [resolvable:$true] %s155
          %s157 = sshll.u32 %s149, 4
          %s158 = int_to_ptr.vmem [resolvable:$true] %s157
          %163 = dma.hbm_to_vmem [thread:$0]  %s156, 256, %s158, %s146, 128, 128, 8
        $region24: #{tpu_custom_call.1} parent=15 // pred_fallthru
          _
      $region16: #{tpu_custom_call.1} parent=5 // pred_fallthru
        _
      %p164 = scmp.le.s32.totalorder 1, %s23
      %p165 = scmp.lt.s32.totalorder %s23, 3
      %p166 = pnand %p164, %p165
      %p167 = pneg %p166
      // Predicated region
      $region25: #{tpu_custom_call.1} parent=5 // pred_check
        _
      $region26: #{tpu_custom_call.1} parent=5 // pred_check_branch
        %169 = sbr.rel (%p166) target = $region28
      $region27: #{tpu_custom_call.1} parent=5 // pred_region
        %s170 = ssub.s32 %s23, 1
        %s171 = sand.u32 %s36, 1
        %s172 = scalar_lea.sflag [#allocation5], %s171
        %s173 = sand.u32 %s36, 1
        %s174 = smul.addr %s173, 16
        %s175 = scalar_lea.vmem [#allocation4], %s174
        // Predicated region
        $region29: #{tpu_custom_call.1} parent=27 // pred_check
          %p176 = pneg %p49
        $region30: #{tpu_custom_call.1} parent=27 // pred_check_branch
          %178 = sbr.rel (%p176) target = $region32
        $region31: #{tpu_custom_call.1} parent=27 // pred_region
          %180 = dma.done %s172, 256
        $region32: #{tpu_custom_call.1} parent=27 // pred_fallthru
          _
        %s181 = sand.u32 %s62, 1
        %s182 = scalar_lea.sflag [#allocation7], %s181
        %s183 = sand.u32 %s62, 1
        %s184 = smul.addr %s183, 16
        %s185 = scalar_lea.vmem [#allocation6], %s184
        // Predicated region
        $region33: #{tpu_custom_call.1} parent=27 // pred_check
          %p186 = pneg %p75
        $region34: #{tpu_custom_call.1} parent=27 // pred_check_branch
          %188 = sbr.rel (%p186) target = $region36
        $region35: #{tpu_custom_call.1} parent=27 // pred_region
          %190 = dma.done %s182, 256
        $region36: #{tpu_custom_call.1} parent=27 // pred_fallthru
          _
        %s191 = sand.u32 %s36, 1
        %s192 = scalar_lea.sflag [#allocation5], %s191
        %s193 = sand.u32 %s36, 1
        %s194 = smul.addr %s193, 16
        %s195 = scalar_lea.vmem [#allocation4], %s194
        %p196 = pneg %p49
        %p197 = pneg %p46
        %s198 = sand.u32 %s62, 1
        %s199 = scalar_lea.sflag [#allocation7], %s198
        %s200 = sand.u32 %s62, 1
        %s201 = smul.addr %s200, 16
        %s202 = scalar_lea.vmem [#allocation6], %s201
        %p203 = pneg %p75
        %p204 = pneg %p72
        %p205 = pneg %p101
        %p206 = pneg %p98
        %p207 = scmp.lt.s32.totalorder %s28, 1
        %s208 = scalar_select %p207, %s28, 1
        %s209 = scalar_lea.vmem %s3, %s208
        %p210 = scmp.lt.s32.totalorder %s28, 1
        %s211 = scalar_select %p210, %s28, 1
        %s212 = scalar_lea.vmem %s3, %s211
        %v214 = vld [vmem:[%s175] sm:$0xff]
        %v215 = vld [vmem:[%s175 + $0x8] sm:$0xff]
        %v216 = vld [vmem:[%s185] sm:$0xff]
        %v217 = vld [vmem:[%s185 + $0x8] sm:$0xff]
        %v218 = vlaneseq
        %v219 = vshrl.u32 %v218, 7
        %v220 = vadd.s32 %v219, 8
        %v221 = vlaneseq
        %v222 = vand.u32 %v221, 127
        %vm223 = vcmp.ge.s32.totalorder %v219, %v222
        %vm224 = vcmp.ge.s32.totalorder %v220, %v222
        %v225 = vadd.s32 %v222, 7
        %vm226 = vcmp.lt.s32.totalorder %v219, %v225
        %vm227 = vcmp.lt.s32.totalorder %v220, %v225
        %vm228 = vmand %vm223, %vm226
        %vm229 = vmand %vm224, %vm227
        %v230 = vsel %vm228, 1.0, 0.0
        %v231 = vsel %vm229, 1.0, 0.0
        %v232 = vpack.c.bf16 %v231, %v230
        %v233 = vmul.f32 %v214, %v214
        %v234 = vmul.f32 %v215, %v215
        %v235 = vmul.f32 %v216, %v216
        %v236 = vmul.f32 %v217, %v217
        %v237 = vmul.f32 %v214, %v216
        %v238 = vmul.f32 %v215, %v217
        %vm241 = vcmask 1046528
        %v242 = vrot.slane %v214, 1
        %v243 = vrot.slane %v215, 1
        %v244 = vsel %vm241, %v242, %v243
        %v247 = vadd.f32 %v214, %v244
        %v248 = vadd.f32 %v215, %v243
        %v251 = vrot.slane %v216, 1
        %v252 = vrot.slane %v217, 1
        %v253 = vsel %vm241, %v251, %v252
        %v256 = vadd.f32 %v216, %v253
        %v257 = vadd.f32 %v217, %v252
        %v260 = vrot.slane %v233, 1
        %v261 = vrot.slane %v234, 1
        %v262 = vsel %vm241, %v260, %v261
        %v265 = vadd.f32 %v233, %v262
        %v266 = vadd.f32 %v234, %v261
        %v269 = vrot.slane %v235, 1
        %v270 = vrot.slane %v236, 1
        %v271 = vsel %vm241, %v269, %v270
        %v274 = vadd.f32 %v235, %v271
        %v275 = vadd.f32 %v236, %v270
        %v278 = vrot.slane %v237, 1
        %v279 = vrot.slane %v238, 1
        %v280 = vsel %vm241, %v278, %v279
        %v283 = vadd.f32 %v237, %v280
        %v284 = vadd.f32 %v238, %v279
        %vm285 = vcmask 1045504
        %v286 = vrot.slane %v214, 2
        %v287 = vrot.slane %v215, 2
        %v288 = vsel %vm285, %v286, %v287
        %v291 = vadd.f32 %v247, %v288
        %v292 = vadd.f32 %v248, %v287
        %v293 = vrot.slane %v216, 2
        %v294 = vrot.slane %v217, 2
        %v295 = vsel %vm285, %v293, %v294
        %v298 = vadd.f32 %v256, %v295
        %v299 = vadd.f32 %v257, %v294
        %v300 = vrot.slane %v233, 2
        %v301 = vrot.slane %v234, 2
        %v302 = vsel %vm285, %v300, %v301
        %v305 = vadd.f32 %v265, %v302
        %v306 = vadd.f32 %v266, %v301
        %v307 = vrot.slane %v235, 2
        %v308 = vrot.slane %v236, 2
        %v309 = vsel %vm285, %v307, %v308
        %v312 = vadd.f32 %v274, %v309
        %v313 = vadd.f32 %v275, %v308
        %v314 = vrot.slane %v237, 2
        %v315 = vrot.slane %v238, 2
        %v316 = vsel %vm285, %v314, %v315
        %v319 = vadd.f32 %v283, %v316
        %v320 = vadd.f32 %v284, %v315
        %vm321 = vcmask 1044480
        %v322 = vrot.slane %v214, 3
        %v323 = vrot.slane %v215, 3
        %v324 = vsel %vm321, %v322, %v323
        %v327 = vadd.f32 %v291, %v324
        %v328 = vadd.f32 %v292, %v323
        %v329 = vrot.slane %v216, 3
        %v330 = vrot.slane %v217, 3
        %v331 = vsel %vm321, %v329, %v330
        %v334 = vadd.f32 %v298, %v331
        %v335 = vadd.f32 %v299, %v330
        %v336 = vrot.slane %v233, 3
        %v337 = vrot.slane %v234, 3
        %v338 = vsel %vm321, %v336, %v337
        %v341 = vadd.f32 %v305, %v338
        %v342 = vadd.f32 %v306, %v337
        %v343 = vrot.slane %v235, 3
        %v344 = vrot.slane %v236, 3
        %v345 = vsel %vm321, %v343, %v344
        %v348 = vadd.f32 %v312, %v345
        %v349 = vadd.f32 %v313, %v344
        %v350 = vrot.slane %v237, 3
        %v351 = vrot.slane %v238, 3
        %v352 = vsel %vm321, %v350, %v351
        %v355 = vadd.f32 %v319, %v352
        %v356 = vadd.f32 %v320, %v351
        %vm357 = vcmask 1043456
        %v358 = vrot.slane %v214, 4
        %v359 = vrot.slane %v215, 4
        %v360 = vsel %vm357, %v358, %v359
        %v363 = vadd.f32 %v327, %v360
        %v364 = vadd.f32 %v328, %v359
        %v365 = vrot.slane %v216, 4
        %v366 = vrot.slane %v217, 4
        %v367 = vsel %vm357, %v365, %v366
        %v370 = vadd.f32 %v334, %v367
        %v371 = vadd.f32 %v335, %v366
        %v372 = vrot.slane %v233, 4
        %v373 = vrot.slane %v234, 4
        %v374 = vsel %vm357, %v372, %v373
        %v377 = vadd.f32 %v341, %v374
        %v378 = vadd.f32 %v342, %v373
        %v379 = vrot.slane %v235, 4
        %v380 = vrot.slane %v236, 4
        %v381 = vsel %vm357, %v379, %v380
        %v384 = vadd.f32 %v348, %v381
        %v385 = vadd.f32 %v349, %v380
        %v386 = vrot.slane %v237, 4
        %v387 = vrot.slane %v238, 4
        %v388 = vsel %vm357, %v386, %v387
        %v391 = vadd.f32 %v355, %v388
        %v392 = vadd.f32 %v356, %v387
        %vm393 = vcmask 1042432
        %v394 = vrot.slane %v214, 5
        %v395 = vrot.slane %v215, 5
        %v396 = vsel %vm393, %v394, %v395
        %v399 = vadd.f32 %v363, %v396
        %v400 = vadd.f32 %v364, %v395
        %v401 = vrot.slane %v216, 5
        %v402 = vrot.slane %v217, 5
        %v403 = vsel %vm393, %v401, %v402
        %v406 = vadd.f32 %v370, %v403
        %v407 = vadd.f32 %v371, %v402
        %v408 = vrot.slane %v233, 5
        %v409 = vrot.slane %v234, 5
        %v410 = vsel %vm393, %v408, %v409
        %v413 = vadd.f32 %v377, %v410
        %v414 = vadd.f32 %v378, %v409
        %v415 = vrot.slane %v235, 5
        %v416 = vrot.slane %v236, 5
        %v417 = vsel %vm393, %v415, %v416
        %v420 = vadd.f32 %v384, %v417
        %v421 = vadd.f32 %v385, %v416
        %v422 = vrot.slane %v237, 5
        %v423 = vrot.slane %v238, 5
        %v424 = vsel %vm393, %v422, %v423
        %v427 = vadd.f32 %v391, %v424
        %v428 = vadd.f32 %v392, %v423
        %vm429 = vcmask 1041408
        %v430 = vrot.slane %v214, 6
        %v431 = vrot.slane %v215, 6
        %v432 = vsel %vm429, %v430, %v431
        %v435 = vadd.f32 %v399, %v432
        %v436 = vadd.f32 %v400, %v431
        %v437 = vrot.slane %v216, 6
        %v438 = vrot.slane %v217, 6
        %v439 = vsel %vm429, %v437, %v438
        %v442 = vadd.f32 %v406, %v439
        %v443 = vadd.f32 %v407, %v438
        %v444 = vrot.slane %v233, 6
        %v445 = vrot.slane %v234, 6
        %v446 = vsel %vm429, %v444, %v445
        %v449 = vadd.f32 %v413, %v446
        %v450 = vadd.f32 %v414, %v445
        %v451 = vrot.slane %v235, 6
        %v452 = vrot.slane %v236, 6
        %v453 = vsel %vm429, %v451, %v452
        %v456 = vadd.f32 %v420, %v453
        %v457 = vadd.f32 %v421, %v452
        %v458 = vrot.slane %v237, 6
        %v459 = vrot.slane %v238, 6
        %v460 = vsel %vm429, %v458, %v459
        %v463 = vadd.f32 %v427, %v460
        %v464 = vadd.f32 %v428, %v459
        %v465 = vpack.c.bf16 %v435, %v435
        %v466 = vpack.c.bf16 %v436, %v436
        %v467 = vunpack.c.l.bf16 %v465
        %v468 = vunpack.c.l.bf16 %v466
        %v469 = vsub.f32 %v435, %v467
        %v470 = vsub.f32 %v436, %v468
        %v471 = vpack.c.bf16 %v469, %v469
        %v472 = vpack.c.bf16 %v470, %v470
        %v473 = vunpack.c.l.bf16 %v471
        %v474 = vunpack.c.l.bf16 %v472
        %v475 = vsub.f32 %v469, %v473
        %v476 = vsub.f32 %v470, %v474
        %v477 = vpack.c.bf16 %v476, %v475
        %v480 = vunpack.c.l.b16 %v471
        %v481 = vunpack.c.l.b16 %v472
        %v482 = vpack.c.b16 %v481, %v480
        %vm483 = vcmask 130048
        %v485 = vsel %vm483, %v482, 0
        %487 = vmatpush.bf16.msra.mxu0 0
        %488 = vmatpush.bf16.msra.mxu0 0
        %489 = vmatpush.bf16.msra.mxu0 0
        %490 = vmatpush.bf16.msra.mxu0 0
        %491 = vmatpush.bf16.msra.mxu0 0
        %492 = vmatpush.bf16.msra.mxu0 0
        %493 = vmatpush.bf16.msra.mxu0 0
        %494 = vmatpush.bf16.msra.mxu0 %v232
        %495 = vmatmul.bf16.gmra.mxu0 %v485
        %v496 = vpop.f32.mrf.mxu0
        %v497 = vadd.f32 0.0, %v496
        %v498 = vpop.f32.mrf.mxu0
        %v499 = vadd.f32 0.0, %v498
        %500 = vdwg.mxu0
        %v503 = vunpack.c.l.b16 %v465
        %v504 = vunpack.c.l.b16 %v466
        %v505 = vpack.c.b16 %v504, %v503
        %v507 = vsel %vm483, %v505, 0
        %509 = vmatpush.bf16.msra.mxu0 0
        %510 = vmatpush.bf16.msra.mxu0 0
        %511 = vmatpush.bf16.msra.mxu0 0
        %512 = vmatpush.bf16.msra.mxu0 0
        %513 = vmatpush.bf16.msra.mxu0 0
        %514 = vmatpush.bf16.msra.mxu0 0
        %515 = vmatpush.bf16.msra.mxu0 0
        %516 = vmatpush.bf16.msra.mxu0 %v232
        %517 = vmatmul.bf16.gmra.mxu0 %v507
        %v518 = vpop.f32.mrf.mxu0
        %v519 = vadd.f32 %v497, %v518
        %v520 = vpop.f32.mrf.mxu0
        %v521 = vadd.f32 %v499, %v520
        %522 = vdwg.mxu0
        %v524 = vsel %vm483, %v477, 0
        %526 = vmatpush.bf16.msra.mxu0 0
        %527 = vmatpush.bf16.msra.mxu0 0
        %528 = vmatpush.bf16.msra.mxu0 0
        %529 = vmatpush.bf16.msra.mxu0 0
        %530 = vmatpush.bf16.msra.mxu0 0
        %531 = vmatpush.bf16.msra.mxu0 0
        %532 = vmatpush.bf16.msra.mxu0 0
        %533 = vmatpush.bf16.msra.mxu0 %v232
        %534 = vmatmul.bf16.gmra.mxu0 %v524
        %v535 = vpop.f32.mrf.mxu0
        %v536 = vadd.f32 0.0, %v535
        %v537 = vpop.f32.mrf.mxu0
        %v538 = vadd.f32 0.0, %v537
        %539 = vdwg.mxu0
        %v540 = vadd.f32 %v519, %v536
        %v541 = vadd.f32 %v521, %v538
        %v542 = vmul.f32 %v540, 0.020408163
        %v543 = vmul.f32 %v541, 0.020408163
        %v544 = vpack.c.bf16 %v442, %v442
        %v545 = vpack.c.bf16 %v443, %v443
        %v546 = vunpack.c.l.bf16 %v544
        %v547 = vunpack.c.l.bf16 %v545
        %v548 = vsub.f32 %v442, %v546
        %v549 = vsub.f32 %v443, %v547
        %v550 = vpack.c.bf16 %v548, %v548
        %v551 = vpack.c.bf16 %v549, %v549
        %v552 = vunpack.c.l.bf16 %v550
        %v553 = vunpack.c.l.bf16 %v551
        %v554 = vsub.f32 %v548, %v552
        %v555 = vsub.f32 %v549, %v553
        %v556 = vpack.c.bf16 %v555, %v554
        %v559 = vunpack.c.l.b16 %v550
        %v560 = vunpack.c.l.b16 %v551
        %v561 = vpack.c.b16 %v560, %v559
        %v563 = vsel %vm483, %v561, 0
        %565 = vmatpush.bf16.msra.mxu0 0
        %566 = vmatpush.bf16.msra.mxu0 0
        %567 = vmatpush.bf16.msra.mxu0 0
        %568 = vmatpush.bf16.msra.mxu0 0
        %569 = vmatpush.bf16.msra.mxu0 0
        %570 = vmatpush.bf16.msra.mxu0 0
        %571 = vmatpush.bf16.msra.mxu0 0
        %572 = vmatpush.bf16.msra.mxu0 %v232
        %573 = vmatmul.bf16.gmra.mxu0 %v563
        %v574 = vpop.f32.mrf.mxu0
        %v575 = vadd.f32 0.0, %v574
        %v576 = vpop.f32.mrf.mxu0
        %v577 = vadd.f32 0.0, %v576
        %578 = vdwg.mxu0
        %v581 = vunpack.c.l.b16 %v544
        %v582 = vunpack.c.l.b16 %v545
        %v583 = vpack.c.b16 %v582, %v581
        %v585 = vsel %vm483, %v583, 0
        %587 = vmatpush.bf16.msra.mxu0 0
        %588 = vmatpush.bf16.msra.mxu0 0
        %589 = vmatpush.bf16.msra.mxu0 0
        %590 = vmatpush.bf16.msra.mxu0 0
        %591 = vmatpush.bf16.msra.mxu0 0
        %592 = vmatpush.bf16.msra.mxu0 0
        %593 = vmatpush.bf16.msra.mxu0 0
        %594 = vmatpush.bf16.msra.mxu0 %v232
        %595 = vmatmul.bf16.gmra.mxu0 %v585
        %v596 = vpop.f32.mrf.mxu0
        %v597 = vadd.f32 %v575, %v596
        %v598 = vpop.f32.mrf.mxu0
        %v599 = vadd.f32 %v577, %v598
        %600 = vdwg.mxu0
        %v602 = vsel %vm483, %v556, 0
        %604 = vmatpush.bf16.msra.mxu0 0
        %605 = vmatpush.bf16.msra.mxu0 0
        %606 = vmatpush.bf16.msra.mxu0 0
        %607 = vmatpush.bf16.msra.mxu0 0
        %608 = vmatpush.bf16.msra.mxu0 0
        %609 = vmatpush.bf16.msra.mxu0 0
        %610 = vmatpush.bf16.msra.mxu0 0
        %611 = vmatpush.bf16.msra.mxu0 %v232
        %612 = vmatmul.bf16.gmra.mxu0 %v602
        %v613 = vpop.f32.mrf.mxu0
        %v614 = vadd.f32 0.0, %v613
        %v615 = vpop.f32.mrf.mxu0
        %v616 = vadd.f32 0.0, %v615
        %617 = vdwg.mxu0
        %v618 = vadd.f32 %v597, %v614
        %v619 = vadd.f32 %v599, %v616
        %v620 = vmul.f32 %v618, 0.020408163
        %v621 = vmul.f32 %v619, 0.020408163
        %v622 = vpack.c.bf16 %v449, %v449
        %v623 = vpack.c.bf16 %v450, %v450
        %v624 = vunpack.c.l.bf16 %v622
        %v625 = vunpack.c.l.bf16 %v623
        %v626 = vsub.f32 %v449, %v624
        %v627 = vsub.f32 %v450, %v625
        %v628 = vpack.c.bf16 %v626, %v626
        %v629 = vpack.c.bf16 %v627, %v627
        %v630 = vunpack.c.l.bf16 %v628
        %v631 = vunpack.c.l.bf16 %v629
        %v632 = vsub.f32 %v626, %v630
        %v633 = vsub.f32 %v627, %v631
        %v634 = vpack.c.bf16 %v633, %v632
        %v637 = vunpack.c.l.b16 %v628
        %v638 = vunpack.c.l.b16 %v629
        %v639 = vpack.c.b16 %v638, %v637
        %v641 = vsel %vm483, %v639, 0
        %643 = vmatpush.bf16.msra.mxu0 0
        %644 = vmatpush.bf16.msra.mxu0 0
        %645 = vmatpush.bf16.msra.mxu0 0
        %646 = vmatpush.bf16.msra.mxu0 0
        %647 = vmatpush.bf16.msra.mxu0 0
        %648 = vmatpush.bf16.msra.mxu0 0
        %649 = vmatpush.bf16.msra.mxu0 0
        %650 = vmatpush.bf16.msra.mxu0 %v232
        %651 = vmatmul.bf16.gmra.mxu0 %v641
        %v652 = vpop.f32.mrf.mxu0
        %v653 = vadd.f32 0.0, %v652
        %v654 = vpop.f32.mrf.mxu0
        %v655 = vadd.f32 0.0, %v654
        %656 = vdwg.mxu0
        %v659 = vunpack.c.l.b16 %v622
        %v660 = vunpack.c.l.b16 %v623
        %v661 = vpack.c.b16 %v660, %v659
        %v663 = vsel %vm483, %v661, 0
        %665 = vmatpush.bf16.msra.mxu0 0
        %666 = vmatpush.bf16.msra.mxu0 0
        %667 = vmatpush.bf16.msra.mxu0 0
        %668 = vmatpush.bf16.msra.mxu0 0
        %669 = vmatpush.bf16.msra.mxu0 0
        %670 = vmatpush.bf16.msra.mxu0 0
        %671 = vmatpush.bf16.msra.mxu0 0
        %672 = vmatpush.bf16.msra.mxu0 %v232
        %673 = vmatmul.bf16.gmra.mxu0 %v663
        %v674 = vpop.f32.mrf.mxu0
        %v675 = vadd.f32 %v653, %v674
        %v676 = vpop.f32.mrf.mxu0
        %v677 = vadd.f32 %v655, %v676
        %678 = vdwg.mxu0
        %v680 = vsel %vm483, %v634, 0
        %682 = vmatpush.bf16.msra.mxu0 0
        %683 = vmatpush.bf16.msra.mxu0 0
        %684 = vmatpush.bf16.msra.mxu0 0
        %685 = vmatpush.bf16.msra.mxu0 0
        %686 = vmatpush.bf16.msra.mxu0 0
        %687 = vmatpush.bf16.msra.mxu0 0
        %688 = vmatpush.bf16.msra.mxu0 0
        %689 = vmatpush.bf16.msra.mxu0 %v232
        %690 = vmatmul.bf16.gmra.mxu0 %v680
        %v691 = vpop.f32.mrf.mxu0
        %v692 = vadd.f32 0.0, %v691
        %v693 = vpop.f32.mrf.mxu0
        %v694 = vadd.f32 0.0, %v693
        %695 = vdwg.mxu0
        %v696 = vadd.f32 %v675, %v692
        %v697 = vadd.f32 %v677, %v694
        %v698 = vmul.f32 %v696, 0.020408163
        %v699 = vmul.f32 %v697, 0.020408163
        %v700 = vpack.c.bf16 %v456, %v456
        %v701 = vpack.c.bf16 %v457, %v457
        %v702 = vunpack.c.l.bf16 %v700
        %v703 = vunpack.c.l.bf16 %v701
        %v704 = vsub.f32 %v456, %v702
        %v705 = vsub.f32 %v457, %v703
        %v706 = vpack.c.bf16 %v704, %v704
        %v707 = vpack.c.bf16 %v705, %v705
        %v708 = vunpack.c.l.bf16 %v706
        %v709 = vunpack.c.l.bf16 %v707
        %v710 = vsub.f32 %v704, %v708
        %v711 = vsub.f32 %v705, %v709
        %v712 = vpack.c.bf16 %v711, %v710
        %v715 = vunpack.c.l.b16 %v706
        %v716 = vunpack.c.l.b16 %v707
        %v717 = vpack.c.b16 %v716, %v715
        %v719 = vsel %vm483, %v717, 0
        %721 = vmatpush.bf16.msra.mxu0 0
        %722 = vmatpush.bf16.msra.mxu0 0
        %723 = vmatpush.bf16.msra.mxu0 0
        %724 = vmatpush.bf16.msra.mxu0 0
        %725 = vmatpush.bf16.msra.mxu0 0
        %726 = vmatpush.bf16.msra.mxu0 0
        %727 = vmatpush.bf16.msra.mxu0 0
        %728 = vmatpush.bf16.msra.mxu0 %v232
        %729 = vmatmul.bf16.gmra.mxu0 %v719
        %v730 = vpop.f32.mrf.mxu0
        %v731 = vadd.f32 0.0, %v730
        %v732 = vpop.f32.mrf.mxu0
        %v733 = vadd.f32 0.0, %v732
        %734 = vdwg.mxu0
        %v737 = vunpack.c.l.b16 %v700
        %v738 = vunpack.c.l.b16 %v701
        %v739 = vpack.c.b16 %v738, %v737
        %v741 = vsel %vm483, %v739, 0
        %743 = vmatpush.bf16.msra.mxu0 0
        %744 = vmatpush.bf16.msra.mxu0 0
        %745 = vmatpush.bf16.msra.mxu0 0
        %746 = vmatpush.bf16.msra.mxu0 0
        %747 = vmatpush.bf16.msra.mxu0 0
        %748 = vmatpush.bf16.msra.mxu0 0
        %749 = vmatpush.bf16.msra.mxu0 0
        %750 = vmatpush.bf16.msra.mxu0 %v232
        %751 = vmatmul.bf16.gmra.mxu0 %v741
        %v752 = vpop.f32.mrf.mxu0
        %v753 = vadd.f32 %v731, %v752
        %v754 = vpop.f32.mrf.mxu0
        %v755 = vadd.f32 %v733, %v754
        %756 = vdwg.mxu0
        %v758 = vsel %vm483, %v712, 0
        %760 = vmatpush.bf16.msra.mxu0 0
        %761 = vmatpush.bf16.msra.mxu0 0
        %762 = vmatpush.bf16.msra.mxu0 0
        %763 = vmatpush.bf16.msra.mxu0 0
        %764 = vmatpush.bf16.msra.mxu0 0
        %765 = vmatpush.bf16.msra.mxu0 0
        %766 = vmatpush.bf16.msra.mxu0 0
        %767 = vmatpush.bf16.msra.mxu0 %v232
        %768 = vmatmul.bf16.gmra.mxu0 %v758
        %v769 = vpop.f32.mrf.mxu0
        %v770 = vadd.f32 0.0, %v769
        %v771 = vpop.f32.mrf.mxu0
        %v772 = vadd.f32 0.0, %v771
        %773 = vdwg.mxu0
        %v774 = vadd.f32 %v753, %v770
        %v775 = vadd.f32 %v755, %v772
        %v776 = vmul.f32 %v774, 0.020408163
        %v777 = vmul.f32 %v775, 0.020408163
        %v778 = vpack.c.bf16 %v463, %v463
        %v779 = vpack.c.bf16 %v464, %v464
        %v780 = vunpack.c.l.bf16 %v778
        %v781 = vunpack.c.l.bf16 %v779
        %v782 = vsub.f32 %v463, %v780
        %v783 = vsub.f32 %v464, %v781
        %v784 = vpack.c.bf16 %v782, %v782
        %v785 = vpack.c.bf16 %v783, %v783
        %v786 = vunpack.c.l.bf16 %v784
        %v787 = vunpack.c.l.bf16 %v785
        %v788 = vsub.f32 %v782, %v786
        %v789 = vsub.f32 %v783, %v787
        %v790 = vpack.c.bf16 %v789, %v788
        %v793 = vunpack.c.l.b16 %v784
        %v794 = vunpack.c.l.b16 %v785
        %v795 = vpack.c.b16 %v794, %v793
        %v797 = vsel %vm483, %v795, 0
        %799 = vmatpush.bf16.msra.mxu0 0
        %800 = vmatpush.bf16.msra.mxu0 0
        %801 = vmatpush.bf16.msra.mxu0 0
        %802 = vmatpush.bf16.msra.mxu0 0
        %803 = vmatpush.bf16.msra.mxu0 0
        %804 = vmatpush.bf16.msra.mxu0 0
        %805 = vmatpush.bf16.msra.mxu0 0
        %806 = vmatpush.bf16.msra.mxu0 %v232
        %807 = vmatmul.bf16.gmra.mxu0 %v797
        %v808 = vpop.f32.mrf.mxu0
        %v809 = vadd.f32 0.0, %v808
        %v810 = vpop.f32.mrf.mxu0
        %v811 = vadd.f32 0.0, %v810
        %812 = vdwg.mxu0
        %v815 = vunpack.c.l.b16 %v778
        %v816 = vunpack.c.l.b16 %v779
        %v817 = vpack.c.b16 %v816, %v815
        %v819 = vsel %vm483, %v817, 0
        %821 = vmatpush.bf16.msra.mxu0 0
        %822 = vmatpush.bf16.msra.mxu0 0
        %823 = vmatpush.bf16.msra.mxu0 0
        %824 = vmatpush.bf16.msra.mxu0 0
        %825 = vmatpush.bf16.msra.mxu0 0
        %826 = vmatpush.bf16.msra.mxu0 0
        %827 = vmatpush.bf16.msra.mxu0 0
        %828 = vmatpush.bf16.msra.mxu0 %v232
        %829 = vmatmul.bf16.gmra.mxu0 %v819
        %v830 = vpop.f32.mrf.mxu0
        %v831 = vadd.f32 %v809, %v830
        %v832 = vpop.f32.mrf.mxu0
        %v833 = vadd.f32 %v811, %v832
        %834 = vdwg.mxu0
        %v836 = vsel %vm483, %v790, 0
        %838 = vmatpush.bf16.msra.mxu0 0
        %839 = vmatpush.bf16.msra.mxu0 0
        %840 = vmatpush.bf16.msra.mxu0 0
        %841 = vmatpush.bf16.msra.mxu0 0
        %842 = vmatpush.bf16.msra.mxu0 0
        %843 = vmatpush.bf16.msra.mxu0 0
        %844 = vmatpush.bf16.msra.mxu0 0
        %845 = vmatpush.bf16.msra.mxu0 %v232
        %846 = vmatmul.bf16.gmra.mxu0 %v836
        %v847 = vpop.f32.mrf.mxu0
        %v848 = vadd.f32 0.0, %v847
        %v849 = vpop.f32.mrf.mxu0
        %v850 = vadd.f32 0.0, %v849
        %851 = vdwg.mxu0
        %v852 = vadd.f32 %v831, %v848
        %v853 = vadd.f32 %v833, %v850
        %v854 = vmul.f32 %v852, 0.020408163
        %v855 = vmul.f32 %v853, 0.020408163
        %s856 = sld [smem:[#allocation3 + %s28]]
        %s857 = smul.f32 %s856, 0.01
        %s858 = smul.f32 %s857, %s857
        %s859 = smul.f32 %s856, 0.03
        %s860 = smul.f32 %s859, %s859
        %v861 = vmul.f32 %v542, %v542
        %v862 = vmul.f32 %v543, %v543
        %v863 = vsub.f32 %v698, %v861
        %v864 = vsub.f32 %v699, %v862
        %v865 = vmul.f32 %v863, 1.0208334
        %v866 = vmul.f32 %v864, 1.0208334
        %v867 = vmul.f32 %v620, %v620
        %v868 = vmul.f32 %v621, %v621
        %v869 = vsub.f32 %v776, %v867
        %v870 = vsub.f32 %v777, %v868
        %v871 = vmul.f32 %v869, 1.0208334
        %v872 = vmul.f32 %v870, 1.0208334
        %v873 = vmul.f32 %v542, %v620
        %v874 = vmul.f32 %v543, %v621
        %v875 = vsub.f32 %v854, %v873
        %v876 = vsub.f32 %v855, %v874
        %v877 = vmul.f32 %v875, 1.0208334
        %v878 = vmul.f32 %v876, 1.0208334
        %v879 = vmul.f32 %v542, 2.0
        %v880 = vmul.f32 %v543, 2.0
        %v881 = vmul.f32 %v879, %v620
        %v882 = vmul.f32 %v880, %v621
        %v883 = vstv %s858
        %v884 = vadd.f32 %v881, %v883
        %v885 = vadd.f32 %v882, %v883
        %v886 = vmul.f32 %v877, 2.0
        %v887 = vmul.f32 %v878, 2.0
        %v888 = vstv %s860
        %v889 = vadd.f32 %v886, %v888
        %v890 = vadd.f32 %v887, %v888
        %v891 = vadd.f32 %v861, %v867
        %v892 = vadd.f32 %v862, %v868
        %v893 = vadd.f32 %v891, %v883
        %v894 = vadd.f32 %v892, %v883
        %v895 = vadd.f32 %v865, %v871
        %v896 = vadd.f32 %v866, %v872
        %v897 = vadd.f32 %v895, %v888
        %v898 = vadd.f32 %v896, %v888
        %v899 = vmul.f32 %v884, %v889
        %v900 = vmul.f32 %v885, %v890
        %v901 = vmul.f32 %v893, %v897
        %v902 = vmul.f32 %v894, %v898
        %v903 = vrcp.pop %v901
        %v904 = vmul.f32 %v901, %v903
        %v905 = vsub.f32 1.0, %v904
        %v906 = vmul.f32 %v903, %v905
        %v907 = vadd.f32 %v903, %v906
        %vm908 = vweird.f32 %v901
        %vm909 = vweird.f32 %v903
        %vm910 = vmor %vm908, %vm909
        %v911 = vsel %vm910, %v903, %v907
        %v912 = vand.u32 2147483647, %v901
        %vm913 = vcmp.eq.f32.partialorder %v912, 8.507059e+37
        %v914 = vand.u32 %v901, 2147483648
        %v915 = vor.u32 1.1754944e-38, %v914
        %v916 = vsel %vm913, %v915, %v911
        %v917 = vrcp.pop %v902
        %v918 = vmul.f32 %v902, %v917
        %v919 = vsub.f32 1.0, %v918
        %v920 = vmul.f32 %v917, %v919
        %v921 = vadd.f32 %v917, %v920
        %vm922 = vweird.f32 %v902
        %vm923 = vweird.f32 %v917
        %vm924 = vmor %vm922, %vm923
        %v925 = vsel %vm924, %v917, %v921
        %v926 = vand.u32 2147483647, %v902
        %vm927 = vcmp.eq.f32.partialorder %v926, 8.507059e+37
        %v928 = vand.u32 %v902, 2147483648
        %v929 = vor.u32 1.1754944e-38, %v928
        %v930 = vsel %vm927, %v929, %v925
        %v931 = vmul.f32 %v899, %v916
        %v932 = vmul.f32 %v900, %v930
        %vm933 = vcmask 80896
        %v934 = vsel %vm933, %v931, 0.0
        %935 = vadd.xlane.f32.xlu0 %v934
        %v936 = vpop.xlane.xlu0 %935
        %vm937 = vcmask 74752
        %v938 = vsel %vm937, %v932, 0.0
        %939 = vadd.xlane.f32.xlu0 %v938
        %v940 = vpop.xlane.xlu0 %939
        %v941 = vsel %vm429, %v940, 0.0
        %v942 = vadd.f32 %v936, %v941
        %v943 = vrot.slane %v942, 4
        %v944 = vadd.f32 %v942, %v943
        %v945 = vrot.slane %v944, 2
        %v946 = vadd.f32 %v944, %v945
        %v947 = vrot.slane %v946, 1
        %v948 = vadd.f32 %v946, %v947
        %vm949 = vcmask 0
        %950 = vst.msk [vmem:[%s212] sm:$0x1] %vm949, %v948
        %p951 = scmp.lt.s32.totalorder %s28, 1
        %s952 = scalar_select %p951, %s28, 1
        %s953 = scalar_lea.vmem %s3, %s952
        // Predicated region
        $region37: #{tpu_custom_call.1} parent=27 // pred_check
          %p954 = pneg %p98
        $region38: #{tpu_custom_call.1} parent=27 // pred_check_branch
          %956 = sbr.rel (%p954) target = $region40
        $region39: #{tpu_custom_call.1} parent=27 // pred_region
          _
        $region40: #{tpu_custom_call.1} parent=27 // pred_fallthru
          _
      $region28: #{tpu_custom_call.1} parent=5 // pred_fallthru
        _
      %p957 = scmp.le.s32.totalorder 2, %s23
      // Predicated region
      $region41: #{tpu_custom_call.1} parent=5 // pred_check
        %p958 = pneg %p957
      $region42: #{tpu_custom_call.1} parent=5 // pred_check_branch
        %960 = sbr.rel (%p958) target = $region44
      $region43: #{tpu_custom_call.1} parent=5 // pred_region
        %s961 = ssub.s32 %s23, 2
        // Predicated region
        $region45: #{tpu_custom_call.1} parent=43 // pred_check
          %p962 = pneg %p104
        $region46: #{tpu_custom_call.1} parent=43 // pred_check_branch
          %964 = sbr.rel (%p962) target = $region48
        $region47: #{tpu_custom_call.1} parent=43 // pred_region
          %p965 = scmp.lt.s32.totalorder %s29, 1
          %s966 = scalar_select %p965, %s29, 1
          %s967 = scalar_lea.vmem %s3, %s966
        $region48: #{tpu_custom_call.1} parent=43 // pred_fallthru
          _
      $region44: #{tpu_custom_call.1} parent=5 // pred_fallthru
        _
    $region6: #{tpu_custom_call.1} parent=1 // loop_footer
      %s27 = sadd.s32 1, %s23
    $region7: #{tpu_custom_call.1} parent=1 // loop_footer_branch
      %22 = sbr.rel target = $region3
    $region8: #{tpu_custom_call.1} parent=1 // loop_exit
      _
    %968 = vsyncpa [#allocation5], 1
    %s969 = scalar_lea.sflag [#allocation5], 1
    %970 = vsyncpa %s969, 1
    %971 = vsyncpa [#allocation7], 1
    %s972 = scalar_lea.sflag [#allocation7], 1
    %973 = vsyncpa %s972, 1

</llo_original>
